<compile_context>
chip_gen: v7x
topology: tpu7x:2x2x1
jax: 0.10.0
libtpu: 0.0.40
codegen_flags: <defaults>
</compile_context>

<pallas_src>
import jax
import jax.numpy as jnp
from jax.experimental import pallas as pl
from jax.experimental.pallas import tpu as pltpu

LEVELS = 5
NUM_REL = LEVELS + 1          # == self.levels in the PyTorch module (6 relations)
NUM_EDGE_REL = NUM_REL - 1    # relations 1..5 actually carry edges


def _round_up(x, m):
    return (x + m - 1) // m * m


def _rgcn2_kernel(x_e_ref, x_m_ref, w_ref, p1_ref, p2_ref, out_ref):
    """Dense 2-layer RGCN on the (Entity, Mole) bipartite graph. Everything in VMEM."""
    n_e, c_in = x_e_ref.shape
    n_m = x_m_ref.shape[0]
    c_out = out_ref.shape[1]
    f32 = jnp.float32

    x_e = x_e_ref[...].astype(f32)          # [N_e, C_in]
    x_m = x_m_ref[...].astype(f32)          # [N_m, C_in]
    w = w_ref[...].astype(f32)              # [N_e, N_m]

    # Packed params: [root | rel_cat] rows, bias in one extra row (cols 0:C_out).
    p1 = p1_ref[...]
    root1 = p1[:c_in, :c_out]               # [C_in, C_out]
    rel1_cat = p1[:c_in, c_out:]            # [C_in, 5*C_out]
    bias1 = p1[c_in:c_in + 1, :c_out]       # [1, C_out]
    p2 = p2_ref[...]
    root2 = p2[:c_out, :c_out]              # [C_out, C_out]
    rel2_cat = p2[:c_out, c_out:]           # [C_out, 5*C_out]
    bias2 = p2[c_out:c_out + 1, :c_out]     # [1, C_out]

    # ---- per-relation row-normalized adjacency (mean aggregation), stacked ----
    # mask_r = (w > r/6) & (w <= (r+1)/6) = gt[r-1] & ~gt[r]; compares are shared.
    gt = [w > (r / NUM_REL) for r in range(1, NUM_REL + 1)]           # r = 1..6
    masks = [jnp.where(gt[i] & jnp.logical_not(gt[i + 1]), 1.0, 0.0)
             for i in range(NUM_EDGE_REL)]
    norms3 = jnp.stack(masks, axis=0)                                  # [5, N_e, N_m]
    deg = jnp.sum(norms3, axis=-1, keepdims=True)                      # [5, N_e, 1]
    norms3 = norms3 / jnp.maximum(deg, 1.0)                            # empty rows -> 0
    norms_v = norms3.reshape(NUM_EDGE_REL * n_e, n_m)                  # [5*N_e, N_m]

    # ---------------- layer 1: RGCNConv(C_in -> C_out) + ReLU ----------------
    x_all = jnp.concatenate([x_e, x_m], axis=0)                        # [N_e+N_m, C_in]
    h_root = jnp.dot(x_all, root1, preferred_element_type=f32) + bias1
    agg1 = jnp.dot(norms_v, x_m, preferred_element_type=f32)           # [5*N_e, C_in]
    full1 = jnp.dot(agg1, rel1_cat, preferred_element_type=f32)        # [5*N_e, 5*C_out]
    # relation-r contribution is the r-th diagonal block of full1
    rel_sum1 = full1[:n_e, :c_out]
    for r in range(1, NUM_EDGE_REL):
        rel_sum1 = rel_sum1 + full1[r * n_e:(r + 1) * n_e,
                                    r * c_out:(r + 1) * c_out]
    h_e = jnp.maximum(h_root[:n_e] + rel_sum1, 0.0)                    # [N_e, C_out]
    h_m = jnp.maximum(h_root[n_e:n_e + n_m], 0.0)                      # [N_m, C_out]

    # ---------------- layer 2: RGCNConv(C_out -> C_out) ----------------------
    out_root = jnp.dot(h_e, root2, preferred_element_type=f32) + bias2
    agg2 = jnp.dot(norms_v, h_m, preferred_element_type=f32)           # [5*N_e, C_out]
    full2 = jnp.dot(agg2, rel2_cat, preferred_element_type=f32)        # [5*N_e, 5*C_out]
    rel_sum2 = full2[:n_e, :c_out]
    for r in range(1, NUM_EDGE_REL):
        rel_sum2 = rel_sum2 + full2[r * n_e:(r + 1) * n_e,
                                    r * c_out:(r + 1) * c_out]
    out_ref[...] = (out_root + rel_sum2).astype(out_ref.dtype)


def _pack_layer_params(root, bias, rel):
    """Pack one RGCNConv's params into a single VMEM buffer: [root | rel_cat] + bias row."""
    c_src, c_out = root.shape
    # rel[0] is never used by the non-degenerate edge construction -> dropped.
    rel_cat = jnp.transpose(rel[1:], (1, 0, 2)).reshape(c_src, NUM_EDGE_REL * c_out)
    rows = _round_up(c_src + 1, 8)          # sublane-aligned bias row
    p = jnp.zeros((rows, (NUM_EDGE_REL + 1) * c_out), jnp.float32)
    p = p.at[:c_src, :c_out].set(root.astype(jnp.float32))
    p = p.at[:c_src, c_out:].set(rel_cat.astype(jnp.float32))
    p = p.at[c_src, :c_out].set(bias.reshape(-1).astype(jnp.float32))
    return p


def init_params(key, in_channels, out_channels):
    """Glorot-uniform init matching RGCNConv parameter shapes; returns (packed, raw)."""
    ks = jax.random.split(key, 4)

    def glorot(k, shape):
        fan_in, fan_out = shape[-2], shape[-1]
        lim = (6.0 / (fan_in + fan_out)) ** 0.5
        return jax.random.uniform(k, shape, jnp.float32, -lim, lim)

    raw = {
        "rel1": glorot(ks[0], (NUM_REL, in_channels, out_channels)),
        "root1": glorot(ks[1], (in_channels, out_channels)),
        "bias1": jnp.zeros((1, out_channels), jnp.float32),
        "rel2": glorot(ks[2], (NUM_REL, out_channels, out_channels)),
        "root2": glorot(ks[3], (out_channels, out_channels)),
        "bias2": jnp.zeros((1, out_channels), jnp.float32),
    }
    packed = {
        "p1": _pack_layer_params(raw["root1"], raw["bias1"], raw["rel1"]),
        "p2": _pack_layer_params(raw["root2"], raw["bias2"], raw["rel2"]),
    }
    return packed, raw


def hetero_effect_graph_forward(emb_entity, emb_mole, entity_mole_weights, packed):
    """emb_entity: [1, N_e, C_in], emb_mole: [1, N_m, C_in], weights: [N_e, N_m]."""
    x_e = emb_entity[0]
    x_m = emb_mole[0]
    n_e = x_e.shape[0]
    c_out = packed["p1"].shape[1] // (NUM_EDGE_REL + 1)

    vmem = pl.BlockSpec(memory_space=pltpu.MemorySpace.VMEM)
    out_entity = pl.pallas_call(
        _rgcn2_kernel,
        out_shape=jax.ShapeDtypeStruct((n_e, c_out), jnp.float32),
        in_specs=[vmem] * 5,
        out_specs=vmem,
    )(x_e, x_m, entity_mole_weights, packed["p1"], packed["p2"])
    return out_entity[None]   # [1, N_e, C_out]


def _reference_forward(emb_entity, emb_mole, w, raw):
    """Straightforward dense per-relation reference (mirrors the PyTorch module)."""
    x_e = emb_entity[0].astype(jnp.float32)
    x_m = emb_mole[0].astype(jnp.float32)
    w = w.astype(jnp.float32)

    def rgcn(h_e, h_m, root, bias, rel):
        o_e = h_e @ root + bias
        o_m = h_m @ root + bias
        for r in range(1, NUM_REL):
            mask = ((w > r / NUM_REL) & (w <= (r + 1) / NUM_REL)).astype(jnp.float32)
            deg = jnp.maximum(mask.sum(-1, keepdims=True), 1.0)
            o_e = o_e + (mask / deg) @ (h_m @ rel[r])
        return o_e, o_m

    h_e, h_m = rgcn(x_e, x_m, raw["root1"], raw["bias1"], raw["rel1"])
    h_e, h_m = jnp.maximum(h_e, 0.0), jnp.maximum(h_m, 0.0)
    o_e, _ = rgcn(h_e, h_m, raw["root2"], raw["bias2"], raw["rel2"])
    return o_e[None]


if __name__ == "__main__":
    key = jax.random.PRNGKey(0)
    k_e, k_m, k_w, k_p = jax.random.split(key, 4)

    N_ENTITY, N_MOLE = 16, 8
    C_IN, C_OUT = 32, 32

    emb_entity = jax.random.normal(k_e, (1, N_ENTITY, C_IN), jnp.float32)
    emb_mole = jax.random.normal(k_m, (1, N_MOLE, C_IN), jnp.float32)
    # weights in (0, 1]; not all-zero, so the bucketed edge construction path is exercised
    entity_mole_weights = jax.random.uniform(k_w, (N_ENTITY, N_MOLE), jnp.float32, 0.01, 1.0)

    packed, raw = init_params(k_p, C_IN, C_OUT)

    out = hetero_effect_graph_forward(emb_entity, emb_mole, entity_mole_weights, packed)
    out = jax.block_until_ready(out)
    assert out.shape == (1, N_ENTITY, C_OUT)
    assert jnp.all(jnp.isfinite(out))

    ref = _reference_forward(emb_entity, emb_mole, entity_mole_weights, raw)
    assert jnp.allclose(out, ref, atol=2e-3, rtol=2e-3), float(jnp.max(jnp.abs(out - ref)))
    print("KERNEL_OK")
</pallas_src>

<mosaic_0001>
module attributes {stable_mosaic.version = 11 : i64} {
  func.func @_rgcn2_kernel(%arg0: memref<16x32xf32, #tpu.memory_space<vmem>>, %arg1: memref<8x32xf32, #tpu.memory_space<vmem>>, %arg2: memref<16x8xf32, #tpu.memory_space<vmem>>, %arg3: memref<40x192xf32, #tpu.memory_space<vmem>>, %arg4: memref<40x192xf32, #tpu.memory_space<vmem>>, %arg5: memref<16x32xf32, #tpu.memory_space<vmem>>) attributes {dimension_semantics = [], scalar_prefetch = 0 : i64, scratch_operands = 0 : i64, tpu.core_type = #tpu.core_type<tc>} {
    %c0 = arith.constant 0 : index
    %c0_0 = arith.constant 0 : index
    %0 = vector.load %arg0[%c0, %c0_0] : memref<16x32xf32, #tpu.memory_space<vmem>>, vector<16x32xf32>
    %c0_1 = arith.constant 0 : index
    %c0_2 = arith.constant 0 : index
    %1 = vector.load %arg1[%c0_1, %c0_2] : memref<8x32xf32, #tpu.memory_space<vmem>>, vector<8x32xf32>
    %c0_3 = arith.constant 0 : index
    %c0_4 = arith.constant 0 : index
    %2 = vector.load %arg2[%c0_3, %c0_4] : memref<16x8xf32, #tpu.memory_space<vmem>>, vector<16x8xf32>
    %c0_5 = arith.constant 0 : index
    %c0_6 = arith.constant 0 : index
    %3 = vector.load %arg3[%c0_5, %c0_6] : memref<40x192xf32, #tpu.memory_space<vmem>>, vector<40x192xf32>
    %4 = vector.extract_strided_slice %3 {offsets = [0, 0], sizes = [32, 32], strides = [1, 1]} : vector<40x192xf32> to vector<32x32xf32>
    %5 = vector.extract_strided_slice %3 {offsets = [0, 32], sizes = [32, 160], strides = [1, 1]} : vector<40x192xf32> to vector<32x160xf32>
    %6 = vector.extract_strided_slice %3 {offsets = [32, 0], sizes = [1, 32], strides = [1, 1]} : vector<40x192xf32> to vector<1x32xf32>
    %c0_7 = arith.constant 0 : index
    %c0_8 = arith.constant 0 : index
    %7 = vector.load %arg4[%c0_7, %c0_8] : memref<40x192xf32, #tpu.memory_space<vmem>>, vector<40x192xf32>
    %8 = vector.extract_strided_slice %7 {offsets = [0, 0], sizes = [32, 32], strides = [1, 1]} : vector<40x192xf32> to vector<32x32xf32>
    %9 = vector.extract_strided_slice %7 {offsets = [0, 32], sizes = [32, 160], strides = [1, 1]} : vector<40x192xf32> to vector<32x160xf32>
    %10 = vector.extract_strided_slice %7 {offsets = [32, 0], sizes = [1, 32], strides = [1, 1]} : vector<40x192xf32> to vector<1x32xf32>
    %cst = arith.constant 0.166666672 : f32
    %11 = vector.broadcast %cst : f32 to vector<16x8xf32>
    %12 = arith.cmpf ogt, %2, %11 : vector<16x8xf32>
    %cst_9 = arith.constant 0.333333343 : f32
    %13 = vector.broadcast %cst_9 : f32 to vector<16x8xf32>
    %14 = arith.cmpf ogt, %2, %13 : vector<16x8xf32>
    %cst_10 = arith.constant 5.000000e-01 : f32
    %15 = vector.broadcast %cst_10 : f32 to vector<16x8xf32>
    %16 = arith.cmpf ogt, %2, %15 : vector<16x8xf32>
    %cst_11 = arith.constant 0.666666686 : f32
    %17 = vector.broadcast %cst_11 : f32 to vector<16x8xf32>
    %18 = arith.cmpf ogt, %2, %17 : vector<16x8xf32>
    %cst_12 = arith.constant 0.833333313 : f32
    %19 = vector.broadcast %cst_12 : f32 to vector<16x8xf32>
    %20 = arith.cmpf ogt, %2, %19 : vector<16x8xf32>
    %cst_13 = arith.constant 1.000000e+00 : f32
    %21 = vector.broadcast %cst_13 : f32 to vector<16x8xf32>
    %22 = arith.cmpf ogt, %2, %21 : vector<16x8xf32>
    %cst_14 = arith.constant dense<true> : vector<16x8xi1>
    %23 = arith.xori %14, %cst_14 : vector<16x8xi1>
    %24 = arith.andi %12, %23 : vector<16x8xi1>
    %cst_15 = arith.constant 1.000000e+00 : f32
    %cst_16 = arith.constant 0.000000e+00 : f32
    %25 = vector.broadcast %cst_15 : f32 to vector<16x8xf32>
    %26 = vector.broadcast %cst_16 : f32 to vector<16x8xf32>
    %27 = arith.select %24, %25, %26 : vector<16x8xi1>, vector<16x8xf32>
    %cst_17 = arith.constant dense<true> : vector<16x8xi1>
    %28 = arith.xori %16, %cst_17 : vector<16x8xi1>
    %29 = arith.andi %14, %28 : vector<16x8xi1>
    %cst_18 = arith.constant 1.000000e+00 : f32
    %cst_19 = arith.constant 0.000000e+00 : f32
    %30 = vector.broadcast %cst_18 : f32 to vector<16x8xf32>
    %31 = vector.broadcast %cst_19 : f32 to vector<16x8xf32>
    %32 = arith.select %29, %30, %31 : vector<16x8xi1>, vector<16x8xf32>
    %cst_20 = arith.constant dense<true> : vector<16x8xi1>
    %33 = arith.xori %18, %cst_20 : vector<16x8xi1>
    %34 = arith.andi %16, %33 : vector<16x8xi1>
    %cst_21 = arith.constant 1.000000e+00 : f32
    %cst_22 = arith.constant 0.000000e+00 : f32
    %35 = vector.broadcast %cst_21 : f32 to vector<16x8xf32>
    %36 = vector.broadcast %cst_22 : f32 to vector<16x8xf32>
    %37 = arith.select %34, %35, %36 : vector<16x8xi1>, vector<16x8xf32>
    %cst_23 = arith.constant dense<true> : vector<16x8xi1>
    %38 = arith.xori %20, %cst_23 : vector<16x8xi1>
    %39 = arith.andi %18, %38 : vector<16x8xi1>
    %cst_24 = arith.constant 1.000000e+00 : f32
    %cst_25 = arith.constant 0.000000e+00 : f32
    %40 = vector.broadcast %cst_24 : f32 to vector<16x8xf32>
    %41 = vector.broadcast %cst_25 : f32 to vector<16x8xf32>
    %42 = arith.select %39, %40, %41 : vector<16x8xi1>, vector<16x8xf32>
    %cst_26 = arith.constant dense<true> : vector<16x8xi1>
    %43 = arith.xori %22, %cst_26 : vector<16x8xi1>
    %44 = arith.andi %20, %43 : vector<16x8xi1>
    %cst_27 = arith.constant 1.000000e+00 : f32
    %cst_28 = arith.constant 0.000000e+00 : f32
    %45 = vector.broadcast %cst_27 : f32 to vector<16x8xf32>
    %46 = vector.broadcast %cst_28 : f32 to vector<16x8xf32>
    %47 = arith.select %44, %45, %46 : vector<16x8xi1>, vector<16x8xf32>
    %48 = vector.shape_cast %27 : vector<16x8xf32> to vector<1x16x8xf32>
    %49 = vector.shape_cast %32 : vector<16x8xf32> to vector<1x16x8xf32>
    %50 = vector.shape_cast %37 : vector<16x8xf32> to vector<1x16x8xf32>
    %51 = vector.shape_cast %42 : vector<16x8xf32> to vector<1x16x8xf32>
    %52 = vector.shape_cast %47 : vector<16x8xf32> to vector<1x16x8xf32>
    %53 = tpu.concatenate %48, %49, %50, %51, %52 in 0 : vector<1x16x8xf32>, vector<1x16x8xf32>, vector<1x16x8xf32>, vector<1x16x8xf32>, vector<1x16x8xf32> -> vector<5x16x8xf32>
    %cst_29 = arith.constant dense<0.000000e+00> : vector<5x16xf32>
    %54 = vector.multi_reduction <add>, %53, %cst_29 [2] : vector<5x16x8xf32> to vector<5x16xf32>
    %55 = vector.shape_cast %54 : vector<5x16xf32> to vector<5x16x1xf32>
    %cst_30 = arith.constant 1.000000e+00 : f32
    %56 = vector.broadcast %cst_30 : f32 to vector<5x16x1xf32>
    %57 = arith.maximumf %55, %56 : vector<5x16x1xf32>
    %58 = vector.broadcast %57 : vector<5x16x1xf32> to vector<5x16x8xf32>
    %59 = arith.divf %53, %58 : vector<5x16x8xf32>
    %60 = vector.shape_cast %59 : vector<5x16x8xf32> to vector<80x8xf32>
    %61 = tpu.concatenate %0, %1 in 0 : vector<16x32xf32>, vector<8x32xf32> -> vector<24x32xf32>
    %cst_31 = arith.constant dense<0.000000e+00> : vector<24x32xf32>
    %62 = tpu.matmul %61, %4, %cst_31 {dimension_numbers = #tpu.dot_dimension_numbers<[1], [0], [0], [1], [0, 0, 1, 1], [], []>} : vector<24x32xf32>, vector<32x32xf32>, vector<24x32xf32> -> vector<24x32xf32>
    %63 = vector.broadcast %6 : vector<1x32xf32> to vector<24x32xf32>
    %64 = arith.addf %62, %63 : vector<24x32xf32>
    %cst_32 = arith.constant dense<0.000000e+00> : vector<80x32xf32>
    %65 = tpu.matmul %60, %1, %cst_32 {dimension_numbers = #tpu.dot_dimension_numbers<[1], [0], [0], [1], [0, 0, 1, 1], [], []>} : vector<80x8xf32>, vector<8x32xf32>, vector<80x32xf32> -> vector<80x32xf32>
    %cst_33 = arith.constant dense<0.000000e+00> : vector<80x160xf32>
    %66 = tpu.matmul %65, %5, %cst_33 {dimension_numbers = #tpu.dot_dimension_numbers<[1], [0], [0], [1], [0, 0, 1, 1], [], []>} : vector<80x32xf32>, vector<32x160xf32>, vector<80x160xf32> -> vector<80x160xf32>
    %67 = vector.extract_strided_slice %66 {offsets = [0, 0], sizes = [16, 32], strides = [1, 1]} : vector<80x160xf32> to vector<16x32xf32>
    %68 = vector.extract_strided_slice %66 {offsets = [16, 32], sizes = [16, 32], strides = [1, 1]} : vector<80x160xf32> to vector<16x32xf32>
    %69 = arith.addf %67, %68 : vector<16x32xf32>
    %70 = vector.extract_strided_slice %66 {offsets = [32, 64], sizes = [16, 32], strides = [1, 1]} : vector<80x160xf32> to vector<16x32xf32>
    %71 = arith.addf %69, %70 : vector<16x32xf32>
    %72 = vector.extract_strided_slice %66 {offsets = [48, 96], sizes = [16, 32], strides = [1, 1]} : vector<80x160xf32> to vector<16x32xf32>
    %73 = arith.addf %71, %72 : vector<16x32xf32>
    %74 = vector.extract_strided_slice %66 {offsets = [64, 128], sizes = [16, 32], strides = [1, 1]} : vector<80x160xf32> to vector<16x32xf32>
    %75 = arith.addf %73, %74 : vector<16x32xf32>
    %76 = vector.extract_strided_slice %64 {offsets = [0, 0], sizes = [16, 32], strides = [1, 1]} : vector<24x32xf32> to vector<16x32xf32>
    %77 = arith.addf %76, %75 : vector<16x32xf32>
    %cst_34 = arith.constant 0.000000e+00 : f32
    %78 = vector.broadcast %cst_34 : f32 to vector<16x32xf32>
    %79 = arith.maximumf %77, %78 : vector<16x32xf32>
    %80 = vector.extract_strided_slice %64 {offsets = [16, 0], sizes = [8, 32], strides = [1, 1]} : vector<24x32xf32> to vector<8x32xf32>
    %cst_35 = arith.constant 0.000000e+00 : f32
    %81 = vector.broadcast %cst_35 : f32 to vector<8x32xf32>
    %82 = arith.maximumf %80, %81 : vector<8x32xf32>
    %cst_36 = arith.constant dense<0.000000e+00> : vector<16x32xf32>
    %83 = tpu.matmul %79, %8, %cst_36 {dimension_numbers = #tpu.dot_dimension_numbers<[1], [0], [0], [1], [0, 0, 1, 1], [], []>} : vector<16x32xf32>, vector<32x32xf32>, vector<16x32xf32> -> vector<16x32xf32>
    %84 = vector.broadcast %10 : vector<1x32xf32> to vector<16x32xf32>
    %85 = arith.addf %83, %84 : vector<16x32xf32>
    %cst_37 = arith.constant dense<0.000000e+00> : vector<80x32xf32>
    %86 = tpu.matmul %60, %82, %cst_37 {dimension_numbers = #tpu.dot_dimension_numbers<[1], [0], [0], [1], [0, 0, 1, 1], [], []>} : vector<80x8xf32>, vector<8x32xf32>, vector<80x32xf32> -> vector<80x32xf32>
    %cst_38 = arith.constant dense<0.000000e+00> : vector<80x160xf32>
    %87 = tpu.matmul %86, %9, %cst_38 {dimension_numbers = #tpu.dot_dimension_numbers<[1], [0], [0], [1], [0, 0, 1, 1], [], []>} : vector<80x32xf32>, vector<32x160xf32>, vector<80x160xf32> -> vector<80x160xf32>
    %88 = vector.extract_strided_slice %87 {offsets = [0, 0], sizes = [16, 32], strides = [1, 1]} : vector<80x160xf32> to vector<16x32xf32>
    %89 = vector.extract_strided_slice %87 {offsets = [16, 32], sizes = [16, 32], strides = [1, 1]} : vector<80x160xf32> to vector<16x32xf32>
    %90 = arith.addf %88, %89 : vector<16x32xf32>
    %91 = vector.extract_strided_slice %87 {offsets = [32, 64], sizes = [16, 32], strides = [1, 1]} : vector<80x160xf32> to vector<16x32xf32>
    %92 = arith.addf %90, %91 : vector<16x32xf32>
    %93 = vector.extract_strided_slice %87 {offsets = [48, 96], sizes = [16, 32], strides = [1, 1]} : vector<80x160xf32> to vector<16x32xf32>
    %94 = arith.addf %92, %93 : vector<16x32xf32>
    %95 = vector.extract_strided_slice %87 {offsets = [64, 128], sizes = [16, 32], strides = [1, 1]} : vector<80x160xf32> to vector<16x32xf32>
    %96 = arith.addf %94, %95 : vector<16x32xf32>
    %97 = arith.addf %85, %96 : vector<16x32xf32>
    %c0_39 = arith.constant 0 : index
    %c0_40 = arith.constant 0 : index
    %98 = vector.load %arg5[%c0_39, %c0_40] : memref<16x32xf32, #tpu.memory_space<vmem>>, vector<16x32xf32>
    tpu.vector_store %arg5[%c0_39, %c0_40], %97 {strides = array<i32>} : memref<16x32xf32, #tpu.memory_space<vmem>>, vector<16x32xf32>,
    return
  }
}

</mosaic_0001>

<llo_original>
// kernel: tpu_custom_call.1
$region0: #{tpu_custom_call.1}
  #allocation0 [shape = 'u32[]', space=smem, size = 0x4, offset = 0x4, fixed_abs, tag = 'smem constant byte address 0x4 - core index']
  #allocation1 [shape = 'u32[144,128]{1,0:T(1,128)}', space=vmem, size = 0x12000, scoped, tag = 'internal scratch']
  %s0 = inlined_call_operand.vmem [shape: f32[16,32], index: 0, kind: input, shape index: {}]
  %s1 = inlined_call_operand.vmem [shape: f32[8,32], index: 1, kind: input, shape index: {}]
  %s2 = inlined_call_operand.vmem [shape: f32[16,8], index: 2, kind: input, shape index: {}]
  %s3 = inlined_call_operand.hbm [shape: f32[40,192], index: 3, kind: input, shape index: {}]
  %s4 = inlined_call_operand.hbm [shape: f32[40,192], index: 4, kind: input, shape index: {}]
  %s5 = inlined_call_operand.hbm [shape: f32[16,32], index: 5, kind: output, shape index: {}]
  %s6 = sld [smem:[#allocation0]]
  $region38: #{tpu_custom_call.1} parent=0
    _
  %s8 = ssub.s32 1, %s6
  %s9 = scalar_select 0, %s8, %s6
  $region1: #{tpu_custom_call.1} parent=0
    #allocation2 [shape = 'u8[40960]{0}', space=vmem, size = 0xa000, scoped, tag = 'input window, operand 3, single buffered']
    #allocation3 [shape = 's32[1]{0}', space=sflag, size = 0x4, scoped, tag = 'scoped memory for tpu_custom_call.1']
    #allocation4 [shape = 's32[1]{0}', space=sflag, size = 0x4, scoped, tag = 'scoped memory for tpu_custom_call.1']
    #allocation5 [shape = 'u8[40960]{0}', space=vmem, size = 0xa000, scoped, tag = 'input window, operand 4, single buffered']
    #allocation6 [shape = 's32[1]{0}', space=sflag, size = 0x4, scoped, tag = 'scoped memory for tpu_custom_call.1']
    #allocation7 [shape = 'u8[8192]{0}', space=vmem, size = 0x2000, scoped, tag = 'output window, operand 0, single buffered']
    %10 = vsyncpa [#allocation3], 0
    %11 = vsyncpa [#allocation6], 0
    %12 = vsyncpa [#allocation4], 0
    // Predicated region
    $region2: #{tpu_custom_call.1} parent=1 // pred_check
      _
    $region3: #{tpu_custom_call.1} parent=1 // pred_check_branch
      %14 = sbr.rel (0) target = $region5
    $region4: #{tpu_custom_call.1} parent=1 // pred_region
      _
    $region5: #{tpu_custom_call.1} parent=1 // pred_fallthru
      _
    // Predicated region
    $region6: #{tpu_custom_call.1} parent=1 // pred_check
      _
    $region7: #{tpu_custom_call.1} parent=1 // pred_check_branch
      %16 = sbr.rel (0) target = $region9
    $region8: #{tpu_custom_call.1} parent=1 // pred_region
      _
    $region9: #{tpu_custom_call.1} parent=1 // pred_fallthru
      _
    // Predicated region
    $region10: #{tpu_custom_call.1} parent=1 // pred_check
      _
    $region11: #{tpu_custom_call.1} parent=1 // pred_check_branch
      %18 = sbr.rel (0) target = $region13
    $region12: #{tpu_custom_call.1} parent=1 // pred_region
      _
    $region13: #{tpu_custom_call.1} parent=1 // pred_fallthru
      _
    // Predicated region
    $region14: #{tpu_custom_call.1} parent=1 // pred_check
      _
    $region15: #{tpu_custom_call.1} parent=1 // pred_check_branch
      %20 = sbr.rel (0) target = $region17
    $region16: #{tpu_custom_call.1} parent=1 // pred_region
      %s22 = ssub.s32 1280, 1280
      %23 = vsyncadd [#allocation3], %s22
      %s24 = sshll.u32 [#allocation2], 4
      %s25 = int_to_ptr.vmem [resolvable:$true] %s24
      %30 = dma.hbm_to_vmem [thread:$0]  %s3, 1280, %s25, [#allocation3], 256, 256, 16
    $region17: #{tpu_custom_call.1} parent=1 // pred_fallthru
      _
    // Predicated region
    $region18: #{tpu_custom_call.1} parent=1 // pred_check
      _
    $region19: #{tpu_custom_call.1} parent=1 // pred_check_branch
      %32 = sbr.rel (0) target = $region21
    $region20: #{tpu_custom_call.1} parent=1 // pred_region
      %s34 = ssub.s32 1280, 1280
      %35 = vsyncadd [#allocation6], %s34
      %s36 = sshll.u32 [#allocation5], 4
      %s37 = int_to_ptr.vmem [resolvable:$true] %s36
      %42 = dma.hbm_to_vmem [thread:$0]  %s4, 1280, %s37, [#allocation6], 256, 256, 16
    $region21: #{tpu_custom_call.1} parent=1 // pred_fallthru
      _
    // Predicated region
    $region22: #{tpu_custom_call.1} parent=1 // pred_check
      _
    $region23: #{tpu_custom_call.1} parent=1 // pred_check_branch
      %44 = sbr.rel (0) target = $region25
    $region24: #{tpu_custom_call.1} parent=1 // pred_region
      %45 = dma.done [#allocation3], 1280
    $region25: #{tpu_custom_call.1} parent=1 // pred_fallthru
      _
    // Predicated region
    $region26: #{tpu_custom_call.1} parent=1 // pred_check
      _
    $region27: #{tpu_custom_call.1} parent=1 // pred_check_branch
      %47 = sbr.rel (0) target = $region29
    $region28: #{tpu_custom_call.1} parent=1 // pred_region
      %48 = dma.done [#allocation6], 1280
    $region29: #{tpu_custom_call.1} parent=1 // pred_fallthru
      _
    %v49 = vld [vmem:[%s0] sm:$0xff]
    %v50 = vld [vmem:[%s0 + $0x8] sm:$0xff]
    %v51 = vld [vmem:[%s1] sm:$0xff]
    %v52 = vld [vmem:[%s2] sm:$0xff]
    %v53 = vld [vmem:[%s2 + $0x8] sm:$0xff]
    %v54 = vld [vmem:[#allocation2] sm:$0xff]
    %v55 = vld [vmem:[#allocation2 + $0x8] sm:$0xff]
    %v56 = vld [vmem:[#allocation2 + $0x10] sm:$0xff]
    %v57 = vld [vmem:[#allocation2 + $0x18] sm:$0xff]
    %v58 = vld [vmem:[#allocation2 + $0x20] sm:$0xff]
    %v59 = vld [vmem:[#allocation2 + $0x28] sm:$0xff]
    %v60 = vld [vmem:[#allocation2 + $0x30] sm:$0xff]
    %v61 = vld [vmem:[#allocation2 + $0x38] sm:$0xff]
    %v62 = vld [vmem:[#allocation2 + $0x40] sm:$0xff]
    %v63 = vld [vmem:[#allocation5] sm:$0xff]
    %v64 = vld [vmem:[#allocation5 + $0x8] sm:$0xff]
    %v65 = vld [vmem:[#allocation5 + $0x10] sm:$0xff]
    %v66 = vld [vmem:[#allocation5 + $0x18] sm:$0xff]
    %v67 = vld [vmem:[#allocation5 + $0x20] sm:$0xff]
    %v68 = vld [vmem:[#allocation5 + $0x28] sm:$0xff]
    %v69 = vld [vmem:[#allocation5 + $0x30] sm:$0xff]
    %v70 = vld [vmem:[#allocation5 + $0x38] sm:$0xff]
    %v71 = vld [vmem:[#allocation5 + $0x40] sm:$0xff]
    %vm72 = vcmp.gt.f32.partialorder %v52, 0.16666667
    %vm73 = vcmp.gt.f32.partialorder %v53, 0.16666667
    %vm74 = vcmp.gt.f32.partialorder %v52, 0.33333334
    %vm75 = vcmp.gt.f32.partialorder %v53, 0.33333334
    %vm76 = vcmp.gt.f32.partialorder %v52, 0.5
    %vm77 = vcmp.gt.f32.partialorder %v53, 0.5
    %vm78 = vcmp.gt.f32.partialorder %v52, 0.6666667
    %vm79 = vcmp.gt.f32.partialorder %v53, 0.6666667
    %vm80 = vcmp.gt.f32.partialorder %v52, 0.8333333
    %vm81 = vcmp.gt.f32.partialorder %v53, 0.8333333
    %vm82 = vcmp.gt.f32.partialorder %v52, 1.0
    %vm83 = vcmp.gt.f32.partialorder %v53, 1.0
    %vm84 = vmxor %vm74, 1
    %vm85 = vmxor %vm75, 1
    %vm86 = vmand %vm72, %vm84
    %vm87 = vmand %vm73, %vm85
    %v88 = vsel %vm86, 1.0, 0.0
    %v89 = vsel %vm87, 1.0, 0.0
    %vm90 = vmxor %vm76, 1
    %vm91 = vmxor %vm77, 1
    %vm92 = vmand %vm74, %vm90
    %vm93 = vmand %vm75, %vm91
    %v94 = vsel %vm92, 1.0, 0.0
    %v95 = vsel %vm93, 1.0, 0.0
    %vm96 = vmxor %vm78, 1
    %vm97 = vmxor %vm79, 1
    %vm98 = vmand %vm76, %vm96
    %vm99 = vmand %vm77, %vm97
    %v100 = vsel %vm98, 1.0, 0.0
    %v101 = vsel %vm99, 1.0, 0.0
    %vm102 = vmxor %vm80, 1
    %vm103 = vmxor %vm81, 1
    %vm104 = vmand %vm78, %vm102
    %vm105 = vmand %vm79, %vm103
    %v106 = vsel %vm104, 1.0, 0.0
    %v107 = vsel %vm105, 1.0, 0.0
    %vm108 = vmxor %vm82, 1
    %vm109 = vmxor %vm83, 1
    %vm110 = vmand %vm80, %vm108
    %vm111 = vmand %vm81, %vm109
    %v112 = vsel %vm110, 1.0, 0.0
    %v113 = vsel %vm111, 1.0, 0.0
    %vm114 = vcmask 64512
    %v115 = vsel %vm114, %v88, 0.0
    %116 = vadd.xlane.f32.xlu0 %v115
    %v117 = vpop.xlane.xlu0 %116
    %v118 = vsel %vm114, %v89, 0.0
    %119 = vadd.xlane.f32.xlu0 %v118
    %v120 = vpop.xlane.xlu0 %119
    %v121 = vsel %vm114, %v94, 0.0
    %122 = vadd.xlane.f32.xlu0 %v121
    %v123 = vpop.xlane.xlu0 %122
    %v124 = vsel %vm114, %v95, 0.0
    %125 = vadd.xlane.f32.xlu0 %v124
    %v126 = vpop.xlane.xlu0 %125
    %v127 = vsel %vm114, %v100, 0.0
    %128 = vadd.xlane.f32.xlu0 %v127
    %v129 = vpop.xlane.xlu0 %128
    %v130 = vsel %vm114, %v101, 0.0
    %131 = vadd.xlane.f32.xlu0 %v130
    %v132 = vpop.xlane.xlu0 %131
    %v133 = vsel %vm114, %v106, 0.0
    %134 = vadd.xlane.f32.xlu0 %v133
    %v135 = vpop.xlane.xlu0 %134
    %v136 = vsel %vm114, %v107, 0.0
    %137 = vadd.xlane.f32.xlu0 %v136
    %v138 = vpop.xlane.xlu0 %137
    %v139 = vsel %vm114, %v112, 0.0
    %140 = vadd.xlane.f32.xlu0 %v139
    %v141 = vpop.xlane.xlu0 %140
    %v142 = vsel %vm114, %v113, 0.0
    %143 = vadd.xlane.f32.xlu0 %v142
    %v144 = vpop.xlane.xlu0 %143
    %v145 = vmax.f32 %v117, 1.0
    %v146 = vmax.f32 %v120, 1.0
    %v147 = vmax.f32 %v123, 1.0
    %v148 = vmax.f32 %v126, 1.0
    %v149 = vmax.f32 %v129, 1.0
    %v150 = vmax.f32 %v132, 1.0
    %v151 = vmax.f32 %v135, 1.0
    %v152 = vmax.f32 %v138, 1.0
    %v153 = vmax.f32 %v141, 1.0
    %v154 = vmax.f32 %v144, 1.0
    %v155 = vrcp.pop %v145
    %v156 = vmul.f32 %v88, %v155
    %v157 = vrcp.pop %v146
    %v158 = vmul.f32 %v89, %v157
    %v159 = vrcp.pop %v147
    %v160 = vmul.f32 %v94, %v159
    %v161 = vrcp.pop %v148
    %v162 = vmul.f32 %v95, %v161
    %v163 = vrcp.pop %v149
    %v164 = vmul.f32 %v100, %v163
    %v165 = vrcp.pop %v150
    %v166 = vmul.f32 %v101, %v165
    %v167 = vrcp.pop %v151
    %v168 = vmul.f32 %v106, %v167
    %v169 = vrcp.pop %v152
    %v170 = vmul.f32 %v107, %v169
    %v171 = vrcp.pop %v153
    %v172 = vmul.f32 %v112, %v171
    %v173 = vrcp.pop %v154
    %v174 = vmul.f32 %v113, %v173
    %v175 = vlaneseq
    %v176 = vshrl.u32 %v175, 7
    %v177 = vsub.s32 0, %v176
    %v178 = vrot.slane %v62, %v177
    %vm179 = vcmask 261120
    %v181 = vsel %vm179, %v49, 0
    %v184 = vsel %vm179, %v50, 0
    %v187 = vsel %vm179, %v51, 0
    %189 = vmatprep.subr.mxu0 0.0
    %190 = vmatpush1.msra.mxu0 %v54
    %191 = vmatprep.subr.mxu0 0.0
    %192 = vmatpush1.msra.mxu0 %v56
    %193 = vmatprep.subr.mxu0 0.0
    %194 = vmatpush1.msra.mxu0 %v58
    %195 = vmatprep.subr.mxu0 0.0
    %196 = vmatpush1.msra.mxu0 %v60
    %197 = vmatprep.subr.mxu0 0.0
    %198 = vmatpush1.msra.mxu0 0.0
    %199 = vmatprep.subr.mxu0 0.0
    %200 = vmatpush1.msra.mxu0 0.0
    %201 = vmatprep.subr.mxu0 0.0
    %202 = vmatpush1.msra.mxu0 0.0
    %203 = vmatprep.subr.mxu0 0.0
    %204 = vmatpush1.msra.mxu0 0.0
    %205 = vmatprep.subr.mxu0 0.0
    %206 = vmatpush1.msra.mxu0 0.0
    %207 = vmatprep.subr.mxu0 0.0
    %208 = vmatpush1.msra.mxu0 0.0
    %209 = vmatprep.subr.mxu0 0.0
    %210 = vmatpush1.msra.mxu0 0.0
    %211 = vmatprep.subr.mxu0 0.0
    %212 = vmatpush1.msra.mxu0 0.0
    %213 = vmatprep.subr.mxu0 0.0
    %214 = vmatpush1.msra.mxu0 0.0
    %215 = vmatprep.subr.mxu0 0.0
    %216 = vmatpush1.msra.mxu0 0.0
    %217 = vmatprep.subr.mxu0 0.0
    %218 = vmatpush1.msra.mxu0 0.0
    %219 = vmatprep.subr.mxu0 0.0
    %220 = vmatpush1.msra.mxu0 0.0
    %221 = vmatprep.subr.mxu0 0.0
    %222 = vmatpush1.msra.mxu0 0.0
    %223 = vmatprep.subr.mxu0 0.0
    %224 = vmatpush1.msra.mxu0 0.0
    %225 = vmatprep.subr.mxu0 0.0
    %226 = vmatpush1.msra.mxu0 0.0
    %227 = vmatprep.subr.mxu0 0.0
    %228 = vmatpush1.msra.mxu0 0.0
    %229 = vmatprep.subr.mxu0 0.0
    %230 = vmatpush1.msra.mxu0 0.0
    %231 = vmatprep.subr.mxu0 0.0
    %232 = vmatpush1.msra.mxu0 0.0
    %233 = vmatprep.subr.mxu0 0.0
    %234 = vmatpush1.msra.mxu0 0.0
    %235 = vmatprep.subr.mxu0 0.0
    %236 = vmatpush1.msra.mxu0 0.0
    %237 = vmatprep.subr.mxu0 0.0
    %238 = vmatpush1.msra.mxu0 0.0
    %239 = vmatprep.subr.mxu0 0.0
    %240 = vmatpush1.msra.mxu0 0.0
    %241 = vmatprep.subr.mxu0 0.0
    %242 = vmatpush1.msra.mxu0 0.0
    %243 = vmatprep.subr.mxu0 0.0
    %244 = vmatpush1.msra.mxu0 0.0
    %245 = vmatprep.subr.mxu0 0.0
    %246 = vmatpush1.msra.mxu0 0.0
    %247 = vmatprep.subr.mxu0 0.0
    %248 = vmatpush1.msra.mxu0 0.0
    %249 = vmatprep.subr.mxu0 0.0
    %250 = vmatpush1.msra.mxu0 0.0
    %251 = vmatprep.subr.mxu0 0.0
    %252 = vmatpush1.msra.mxu0 0.0
    %253 = vmatprep.mubr.f32.mxu0 0.0
    %254 = vmatmul.mubr.f32.gmra.mrb[0].mxu0 %v181
    %v255 = vpop.f32.mrb[0].mxu0
    %v256 = vadd.f32 %v178, %v255
    %v257 = vpop.f32.mrb[0].mxu0
    %258 = vmatprep.mubr.f32.mxu0 0.0
    %259 = vmatmul.mubr.f32.gmra.mrb[0].mxu0 %v184
    %v260 = vpop.f32.mrb[0].mxu0
    %v261 = vadd.f32 %v178, %v260
    %v262 = vpop.f32.mrb[0].mxu0
    %263 = vmatprep.mubr.f32.mxu0 0.0
    %264 = vmatmul.mubr.f32.gmra.mrb[0].mxu0 %v187
    %v265 = vpop.f32.mrb[0].mxu0
    %v266 = vadd.f32 %v178, %v265
    %v267 = vpop.f32.mrb[0].mxu0
    %268 = vdwg.mxu0
    %v270 = vsel %vm114, %v156, 0
    %v273 = vsel %vm114, %v158, 0
    %v276 = vsel %vm114, %v160, 0
    %v279 = vsel %vm114, %v162, 0
    %v282 = vsel %vm114, %v164, 0
    %v285 = vsel %vm114, %v166, 0
    %v288 = vsel %vm114, %v168, 0
    %v291 = vsel %vm114, %v170, 0
    %v294 = vsel %vm114, %v172, 0
    %v297 = vsel %vm114, %v174, 0
    %299 = vmatprep.subr.mxu0 0.0
    %300 = vmatpush1.msra.mxu0 %v51
    %301 = vmatprep.subr.mxu0 0.0
    %302 = vmatpush1.msra.mxu0 0.0
    %303 = vmatprep.subr.mxu0 0.0
    %304 = vmatpush1.msra.mxu0 0.0
    %305 = vmatprep.subr.mxu0 0.0
    %306 = vmatpush1.msra.mxu0 0.0
    %307 = vmatprep.subr.mxu0 0.0
    %308 = vmatpush1.msra.mxu0 0.0
    %309 = vmatprep.subr.mxu0 0.0
    %310 = vmatpush1.msra.mxu0 0.0
    %311 = vmatprep.subr.mxu0 0.0
    %312 = vmatpush1.msra.mxu0 0.0
    %313 = vmatprep.subr.mxu0 0.0
    %314 = vmatpush1.msra.mxu0 0.0
    %315 = vmatprep.subr.mxu0 0.0
    %316 = vmatpush1.msra.mxu0 0.0
    %317 = vmatprep.subr.mxu0 0.0
    %318 = vmatpush1.msra.mxu0 0.0
    %319 = vmatprep.subr.mxu0 0.0
    %320 = vmatpush1.msra.mxu0 0.0
    %321 = vmatprep.subr.mxu0 0.0
    %322 = vmatpush1.msra.mxu0 0.0
    %323 = vmatprep.subr.mxu0 0.0
    %324 = vmatpush1.msra.mxu0 0.0
    %325 = vmatprep.subr.mxu0 0.0
    %326 = vmatpush1.msra.mxu0 0.0
    %327 = vmatprep.subr.mxu0 0.0
    %328 = vmatpush1.msra.mxu0 0.0
    %329 = vmatprep.subr.mxu0 0.0
    %330 = vmatpush1.msra.mxu0 0.0
    %331 = vmatprep.subr.mxu0 0.0
    %332 = vmatpush1.msra.mxu0 0.0
    %333 = vmatprep.subr.mxu0 0.0
    %334 = vmatpush1.msra.mxu0 0.0
    %335 = vmatprep.subr.mxu0 0.0
    %336 = vmatpush1.msra.mxu0 0.0
    %337 = vmatprep.subr.mxu0 0.0
    %338 = vmatpush1.msra.mxu0 0.0
    %339 = vmatprep.subr.mxu0 0.0
    %340 = vmatpush1.msra.mxu0 0.0
    %341 = vmatprep.subr.mxu0 0.0
    %342 = vmatpush1.msra.mxu0 0.0
    %343 = vmatprep.subr.mxu0 0.0
    %344 = vmatpush1.msra.mxu0 0.0
    %345 = vmatprep.subr.mxu0 0.0
    %346 = vmatpush1.msra.mxu0 0.0
    %347 = vmatprep.subr.mxu0 0.0
    %348 = vmatpush1.msra.mxu0 0.0
    %349 = vmatprep.subr.mxu0 0.0
    %350 = vmatpush1.msra.mxu0 0.0
    %351 = vmatprep.subr.mxu0 0.0
    %352 = vmatpush1.msra.mxu0 0.0
    %353 = vmatprep.subr.mxu0 0.0
    %354 = vmatpush1.msra.mxu0 0.0
    %355 = vmatprep.subr.mxu0 0.0
    %356 = vmatpush1.msra.mxu0 0.0
    %357 = vmatprep.subr.mxu0 0.0
    %358 = vmatpush1.msra.mxu0 0.0
    %359 = vmatprep.subr.mxu0 0.0
    %360 = vmatpush1.msra.mxu0 0.0
    %361 = vmatprep.subr.mxu0 0.0
    %362 = vmatpush1.msra.mxu0 0.0
    %363 = vmatprep.mubr.f32.mxu0 0.0
    %364 = vmatmul.mubr.f32.gmra.mrb[0].mxu0 %v270
    %v365 = vpop.f32.mrb[0].mxu0
    %v366 = vadd.f32 0.0, %v365
    %v367 = vpop.f32.mrb[0].mxu0
    %368 = vmatprep.mubr.f32.mxu0 0.0
    %369 = vmatmul.mubr.f32.gmra.mrb[0].mxu0 %v273
    %v370 = vpop.f32.mrb[0].mxu0
    %v371 = vadd.f32 0.0, %v370
    %v372 = vpop.f32.mrb[0].mxu0
    %373 = vmatprep.mubr.f32.mxu0 0.0
    %374 = vmatmul.mubr.f32.gmra.mrb[0].mxu0 %v276
    %v375 = vpop.f32.mrb[0].mxu0
    %v376 = vadd.f32 0.0, %v375
    %v377 = vpop.f32.mrb[0].mxu0
    %378 = vmatprep.mubr.f32.mxu0 0.0
    %379 = vmatmul.mubr.f32.gmra.mrb[0].mxu0 %v279
    %v380 = vpop.f32.mrb[0].mxu0
    %v381 = vadd.f32 0.0, %v380
    %v382 = vpop.f32.mrb[0].mxu0
    %383 = vmatprep.mubr.f32.mxu0 0.0
    %384 = vmatmul.mubr.f32.gmra.mrb[0].mxu0 %v282
    %v385 = vpop.f32.mrb[0].mxu0
    %v386 = vadd.f32 0.0, %v385
    %v387 = vpop.f32.mrb[0].mxu0
    %388 = vmatprep.mubr.f32.mxu0 0.0
    %389 = vmatmul.mubr.f32.gmra.mrb[0].mxu0 %v285
    %v390 = vpop.f32.mrb[0].mxu0
    %v391 = vadd.f32 0.0, %v390
    %v392 = vpop.f32.mrb[0].mxu0
    %393 = vmatprep.mubr.f32.mxu0 0.0
    %394 = vmatmul.mubr.f32.gmra.mrb[0].mxu0 %v288
    %v395 = vpop.f32.mrb[0].mxu0
    %v396 = vadd.f32 0.0, %v395
    %v397 = vpop.f32.mrb[0].mxu0
    %398 = vmatprep.mubr.f32.mxu0 0.0
    %399 = vmatmul.mubr.f32.gmra.mrb[0].mxu0 %v291
    %v400 = vpop.f32.mrb[0].mxu0
    %v401 = vadd.f32 0.0, %v400
    %v402 = vpop.f32.mrb[0].mxu0
    %403 = vmatprep.mubr.f32.mxu0 0.0
    %404 = vmatmul.mubr.f32.gmra.mrb[0].mxu0 %v294
    %v405 = vpop.f32.mrb[0].mxu0
    %v406 = vadd.f32 0.0, %v405
    %v407 = vpop.f32.mrb[0].mxu0
    %408 = vmatprep.mubr.f32.mxu0 0.0
    %409 = vmatmul.mubr.f32.gmra.mrb[0].mxu0 %v297
    %v410 = vpop.f32.mrb[0].mxu0
    %v411 = vadd.f32 0.0, %v410
    %v412 = vpop.f32.mrb[0].mxu0
    %413 = vdwg.mxu0
    %422 = vrot.lane.b32.xlu0 %v54, 96
    %v423 = vpop.permute.xlu0 %422
    %424 = vrot.lane.b32.xlu0 %v55, 96
    %v425 = vpop.permute.xlu0 %424
    %426 = vrot.lane.b32.xlu0 %v56, 96
    %v427 = vpop.permute.xlu0 %426
    %428 = vrot.lane.b32.xlu0 %v57, 96
    %v429 = vpop.permute.xlu0 %428
    %430 = vrot.lane.b32.xlu0 %v58, 96
    %v431 = vpop.permute.xlu0 %430
    %432 = vrot.lane.b32.xlu0 %v59, 96
    %v433 = vpop.permute.xlu0 %432
    %434 = vrot.lane.b32.xlu0 %v60, 96
    %v435 = vpop.permute.xlu0 %434
    %436 = vrot.lane.b32.xlu0 %v61, 96
    %v437 = vpop.permute.xlu0 %436
    %vm438 = vcmask 785408
    %v439 = vsel %vm438, %v423, %v425
    %v440 = vsel %vm438, %v427, %v429
    %v441 = vsel %vm438, %v431, %v433
    %v442 = vsel %vm438, %v435, %v437
    %v452 = vsel %vm179, %v366, 0
    %v455 = vsel %vm179, %v371, 0
    %v458 = vsel %vm179, %v376, 0
    %v461 = vsel %vm179, %v381, 0
    %v464 = vsel %vm179, %v386, 0
    %v467 = vsel %vm179, %v391, 0
    %v470 = vsel %vm179, %v396, 0
    %v473 = vsel %vm179, %v401, 0
    %v476 = vsel %vm179, %v406, 0
    %v479 = vsel %vm179, %v411, 0
    %481 = vmatprep.subr.mxu0 %v425
    %482 = vmatpush1.msra.mxu0 %v439
    %483 = vmatprep.subr.mxu0 %v429
    %484 = vmatpush1.msra.mxu0 %v440
    %485 = vmatprep.subr.mxu0 %v433
    %486 = vmatpush1.msra.mxu0 %v441
    %487 = vmatprep.subr.mxu0 %v437
    %488 = vmatpush1.msra.mxu0 %v442
    %489 = vmatprep.subr.mxu0 0.0
    %490 = vmatpush1.msra.mxu0 0.0
    %491 = vmatprep.subr.mxu0 0.0
    %492 = vmatpush1.msra.mxu0 0.0
    %493 = vmatprep.subr.mxu0 0.0
    %494 = vmatpush1.msra.mxu0 0.0
    %495 = vmatprep.subr.mxu0 0.0
    %496 = vmatpush1.msra.mxu0 0.0
    %497 = vmatprep.subr.mxu0 0.0
    %498 = vmatpush1.msra.mxu0 0.0
    %499 = vmatprep.subr.mxu0 0.0
    %500 = vmatpush1.msra.mxu0 0.0
    %501 = vmatprep.subr.mxu0 0.0
    %502 = vmatpush1.msra.mxu0 0.0
    %503 = vmatprep.subr.mxu0 0.0
    %504 = vmatpush1.msra.mxu0 0.0
    %505 = vmatprep.subr.mxu0 0.0
    %506 = vmatpush1.msra.mxu0 0.0
    %507 = vmatprep.subr.mxu0 0.0
    %508 = vmatpush1.msra.mxu0 0.0
    %509 = vmatprep.subr.mxu0 0.0
    %510 = vmatpush1.msra.mxu0 0.0
    %511 = vmatprep.subr.mxu0 0.0
    %512 = vmatpush1.msra.mxu0 0.0
    %513 = vmatprep.subr.mxu0 0.0
    %514 = vmatpush1.msra.mxu0 0.0
    %515 = vmatprep.subr.mxu0 0.0
    %516 = vmatpush1.msra.mxu0 0.0
    %517 = vmatprep.subr.mxu0 0.0
    %518 = vmatpush1.msra.mxu0 0.0
    %519 = vmatprep.subr.mxu0 0.0
    %520 = vmatpush1.msra.mxu0 0.0
    %521 = vmatprep.subr.mxu0 0.0
    %522 = vmatpush1.msra.mxu0 0.0
    %523 = vmatprep.subr.mxu0 0.0
    %524 = vmatpush1.msra.mxu0 0.0
    %525 = vmatprep.subr.mxu0 0.0
    %526 = vmatpush1.msra.mxu0 0.0
    %527 = vmatprep.subr.mxu0 0.0
    %528 = vmatpush1.msra.mxu0 0.0
    %529 = vmatprep.subr.mxu0 0.0
    %530 = vmatpush1.msra.mxu0 0.0
    %531 = vmatprep.subr.mxu0 0.0
    %532 = vmatpush1.msra.mxu0 0.0
    %533 = vmatprep.subr.mxu0 0.0
    %534 = vmatpush1.msra.mxu0 0.0
    %535 = vmatprep.subr.mxu0 0.0
    %536 = vmatpush1.msra.mxu0 0.0
    %537 = vmatprep.subr.mxu0 0.0
    %538 = vmatpush1.msra.mxu0 0.0
    %539 = vmatprep.subr.mxu0 0.0
    %540 = vmatpush1.msra.mxu0 0.0
    %541 = vmatprep.subr.mxu0 0.0
    %542 = vmatpush1.msra.mxu0 0.0
    %543 = vmatprep.subr.mxu0 0.0
    %544 = vmatpush1.msra.mxu0 0.0
    %545 = vmatprep.mubr.f32.mxu0 0.0
    %546 = vmatmul.mubr.f32.gmra.mrb[0].mxu0 %v452
    %v547 = vpop.f32.mrb[0].mxu0
    %v548 = vadd.f32 0.0, %v547
    %v549 = vpop.f32.mrb[0].mxu0
    %550 = vmatprep.mubr.f32.mxu0 0.0
    %551 = vmatmul.mubr.f32.gmra.mrb[0].mxu0 %v455
    %v552 = vpop.f32.mrb[0].mxu0
    %v553 = vadd.f32 0.0, %v552
    %v554 = vpop.f32.mrb[0].mxu0
    %555 = vmatprep.mubr.f32.mxu0 0.0
    %556 = vmatmul.mubr.f32.gmra.mrb[0].mxu0 %v458
    %v557 = vpop.f32.mrb[0].mxu0
    %v558 = vadd.f32 0.0, %v557
    %v559 = vpop.f32.mrb[0].mxu0
    %560 = vmatprep.mubr.f32.mxu0 0.0
    %561 = vmatmul.mubr.f32.gmra.mrb[0].mxu0 %v461
    %v562 = vpop.f32.mrb[0].mxu0
    %v563 = vadd.f32 0.0, %v562
    %v564 = vpop.f32.mrb[0].mxu0
    %565 = vmatprep.mubr.f32.mxu0 0.0
    %566 = vmatmul.mubr.f32.gmra.mrb[0].mxu0 %v464
    %v567 = vpop.f32.mrb[0].mxu0
    %v568 = vadd.f32 0.0, %v567
    %v569 = vpop.f32.mrb[0].mxu0
    %570 = vmatprep.mubr.f32.mxu0 0.0
    %571 = vmatmul.mubr.f32.gmra.mrb[0].mxu0 %v467
    %v572 = vpop.f32.mrb[0].mxu0
    %v573 = vadd.f32 0.0, %v572
    %v574 = vpop.f32.mrb[0].mxu0
    %575 = vmatprep.mubr.f32.mxu0 0.0
    %576 = vmatmul.mubr.f32.gmra.mrb[0].mxu0 %v470
    %v577 = vpop.f32.mrb[0].mxu0
    %v578 = vadd.f32 0.0, %v577
    %v579 = vpop.f32.mrb[0].mxu0
    %580 = vmatprep.mubr.f32.mxu0 0.0
    %581 = vmatmul.mubr.f32.gmra.mrb[0].mxu0 %v473
    %v582 = vpop.f32.mrb[0].mxu0
    %v583 = vadd.f32 0.0, %v582
    %v584 = vpop.f32.mrb[0].mxu0
    %585 = vmatprep.mubr.f32.mxu0 0.0
    %586 = vmatmul.mubr.f32.gmra.mrb[0].mxu0 %v476
    %v587 = vpop.f32.mrb[0].mxu0
    %v588 = vpop.f32.mrb[0].mxu0
    %v589 = vadd.f32 0.0, %v588
    %590 = vmatprep.mubr.f32.mxu0 0.0
    %591 = vmatmul.mubr.f32.gmra.mrb[0].mxu0 %v479
    %v592 = vpop.f32.mrb[0].mxu0
    %v593 = vpop.f32.mrb[0].mxu0
    %v594 = vadd.f32 0.0, %v593
    %595 = vdwg.mxu0
    %598 = vrot.lane.b32.xlu0 %v558, 96
    %v599 = vpop.permute.xlu0 %598
    %600 = vrot.lane.b32.xlu0 %v563, 96
    %v601 = vpop.permute.xlu0 %600
    %v604 = vadd.f32 %v548, %v599
    %v605 = vadd.f32 %v553, %v601
    %608 = vrot.lane.b32.xlu0 %v568, 64
    %v609 = vpop.permute.xlu0 %608
    %610 = vrot.lane.b32.xlu0 %v573, 64
    %v611 = vpop.permute.xlu0 %610
    %v614 = vadd.f32 %v604, %v609
    %v615 = vadd.f32 %v605, %v611
    %618 = vrot.lane.b32.xlu0 %v578, 32
    %v619 = vpop.permute.xlu0 %618
    %620 = vrot.lane.b32.xlu0 %v583, 32
    %v621 = vpop.permute.xlu0 %620
    %v624 = vadd.f32 %v614, %v619
    %v625 = vadd.f32 %v615, %v621
    %v626 = vadd.f32 %v624, %v589
    %v627 = vadd.f32 %v625, %v594
    %v628 = vadd.f32 %v256, %v626
    %v629 = vadd.f32 %v261, %v627
    %v630 = vmax.f32 %v628, 0.0
    %v631 = vmax.f32 %v629, 0.0
    %v632 = vmax.f32 %v266, 0.0
    %v633 = vlaneseq
    %v634 = vshrl.u32 %v633, 7
    %v635 = vsub.s32 0, %v634
    %v636 = vrot.slane %v71, %v635
    %v638 = vsel %vm179, %v630, 0
    %v641 = vsel %vm179, %v631, 0
    %643 = vmatprep.subr.mxu0 0.0
    %644 = vmatpush1.msra.mxu0 %v63
    %645 = vmatprep.subr.mxu0 0.0
    %646 = vmatpush1.msra.mxu0 %v65
    %647 = vmatprep.subr.mxu0 0.0
    %648 = vmatpush1.msra.mxu0 %v67
    %649 = vmatprep.subr.mxu0 0.0
    %650 = vmatpush1.msra.mxu0 %v69
    %651 = vmatprep.subr.mxu0 0.0
    %652 = vmatpush1.msra.mxu0 0.0
    %653 = vmatprep.subr.mxu0 0.0
    %654 = vmatpush1.msra.mxu0 0.0
    %655 = vmatprep.subr.mxu0 0.0
    %656 = vmatpush1.msra.mxu0 0.0
    %657 = vmatprep.subr.mxu0 0.0
    %658 = vmatpush1.msra.mxu0 0.0
    %659 = vmatprep.subr.mxu0 0.0
    %660 = vmatpush1.msra.mxu0 0.0
    %661 = vmatprep.subr.mxu0 0.0
    %662 = vmatpush1.msra.mxu0 0.0
    %663 = vmatprep.subr.mxu0 0.0
    %664 = vmatpush1.msra.mxu0 0.0
    %665 = vmatprep.subr.mxu0 0.0
    %666 = vmatpush1.msra.mxu0 0.0
    %667 = vmatprep.subr.mxu0 0.0
    %668 = vmatpush1.msra.mxu0 0.0
    %669 = vmatprep.subr.mxu0 0.0
    %670 = vmatpush1.msra.mxu0 0.0
    %671 = vmatprep.subr.mxu0 0.0
    %672 = vmatpush1.msra.mxu0 0.0
    %673 = vmatprep.subr.mxu0 0.0
    %674 = vmatpush1.msra.mxu0 0.0
    %675 = vmatprep.subr.mxu0 0.0
    %676 = vmatpush1.msra.mxu0 0.0
    %677 = vmatprep.subr.mxu0 0.0
    %678 = vmatpush1.msra.mxu0 0.0
    %679 = vmatprep.subr.mxu0 0.0
    %680 = vmatpush1.msra.mxu0 0.0
    %681 = vmatprep.subr.mxu0 0.0
    %682 = vmatpush1.msra.mxu0 0.0
    %683 = vmatprep.subr.mxu0 0.0
    %684 = vmatpush1.msra.mxu0 0.0
    %685 = vmatprep.subr.mxu0 0.0
    %686 = vmatpush1.msra.mxu0 0.0
    %687 = vmatprep.subr.mxu0 0.0
    %688 = vmatpush1.msra.mxu0 0.0
    %689 = vmatprep.subr.mxu0 0.0
    %690 = vmatpush1.msra.mxu0 0.0
    %691 = vmatprep.subr.mxu0 0.0
    %692 = vmatpush1.msra.mxu0 0.0
    %693 = vmatprep.subr.mxu0 0.0
    %694 = vmatpush1.msra.mxu0 0.0
    %695 = vmatprep.subr.mxu0 0.0
    %696 = vmatpush1.msra.mxu0 0.0
    %697 = vmatprep.subr.mxu0 0.0
    %698 = vmatpush1.msra.mxu0 0.0
    %699 = vmatprep.subr.mxu0 0.0
    %700 = vmatpush1.msra.mxu0 0.0
    %701 = vmatprep.subr.mxu0 0.0
    %702 = vmatpush1.msra.mxu0 0.0
    %703 = vmatprep.subr.mxu0 0.0
    %704 = vmatpush1.msra.mxu0 0.0
    %705 = vmatprep.subr.mxu0 0.0
    %706 = vmatpush1.msra.mxu0 0.0
    %707 = vmatprep.mubr.f32.mxu0 0.0
    %708 = vmatmul.mubr.f32.gmra.mrb[0].mxu0 %v638
    %v709 = vpop.f32.mrb[0].mxu0
    %v710 = vadd.f32 %v636, %v709
    %v711 = vpop.f32.mrb[0].mxu0
    %712 = vmatprep.mubr.f32.mxu0 0.0
    %713 = vmatmul.mubr.f32.gmra.mrb[0].mxu0 %v641
    %v714 = vpop.f32.mrb[0].mxu0
    %v715 = vadd.f32 %v636, %v714
    %v716 = vpop.f32.mrb[0].mxu0
    %717 = vdwg.mxu0
    %718 = vmatprep.subr.mxu0 0.0
    %719 = vmatpush1.msra.mxu0 %v632
    %720 = vmatprep.subr.mxu0 0.0
    %721 = vmatpush1.msra.mxu0 0.0
    %722 = vmatprep.subr.mxu0 0.0
    %723 = vmatpush1.msra.mxu0 0.0
    %724 = vmatprep.subr.mxu0 0.0
    %725 = vmatpush1.msra.mxu0 0.0
    %726 = vmatprep.subr.mxu0 0.0
    %727 = vmatpush1.msra.mxu0 0.0
    %728 = vmatprep.subr.mxu0 0.0
    %729 = vmatpush1.msra.mxu0 0.0
    %730 = vmatprep.subr.mxu0 0.0
    %731 = vmatpush1.msra.mxu0 0.0
    %732 = vmatprep.subr.mxu0 0.0
    %733 = vmatpush1.msra.mxu0 0.0
    %734 = vmatprep.subr.mxu0 0.0
    %735 = vmatpush1.msra.mxu0 0.0
    %736 = vmatprep.subr.mxu0 0.0
    %737 = vmatpush1.msra.mxu0 0.0
    %738 = vmatprep.subr.mxu0 0.0
    %739 = vmatpush1.msra.mxu0 0.0
    %740 = vmatprep.subr.mxu0 0.0
    %741 = vmatpush1.msra.mxu0 0.0
    %742 = vmatprep.subr.mxu0 0.0
    %743 = vmatpush1.msra.mxu0 0.0
    %744 = vmatprep.subr.mxu0 0.0
    %745 = vmatpush1.msra.mxu0 0.0
    %746 = vmatprep.subr.mxu0 0.0
    %747 = vmatpush1.msra.mxu0 0.0
    %748 = vmatprep.subr.mxu0 0.0
    %749 = vmatpush1.msra.mxu0 0.0
    %750 = vmatprep.subr.mxu0 0.0
    %751 = vmatpush1.msra.mxu0 0.0
    %752 = vmatprep.subr.mxu0 0.0
    %753 = vmatpush1.msra.mxu0 0.0
    %754 = vmatprep.subr.mxu0 0.0
    %755 = vmatpush1.msra.mxu0 0.0
    %756 = vmatprep.subr.mxu0 0.0
    %757 = vmatpush1.msra.mxu0 0.0
    %758 = vmatprep.subr.mxu0 0.0
    %759 = vmatpush1.msra.mxu0 0.0
    %760 = vmatprep.subr.mxu0 0.0
    %761 = vmatpush1.msra.mxu0 0.0
    %762 = vmatprep.subr.mxu0 0.0
    %763 = vmatpush1.msra.mxu0 0.0
    %764 = vmatprep.subr.mxu0 0.0
    %765 = vmatpush1.msra.mxu0 0.0
    %766 = vmatprep.subr.mxu0 0.0
    %767 = vmatpush1.msra.mxu0 0.0
    %768 = vmatprep.subr.mxu0 0.0
    %769 = vmatpush1.msra.mxu0 0.0
    %770 = vmatprep.subr.mxu0 0.0
    %771 = vmatpush1.msra.mxu0 0.0
    %772 = vmatprep.subr.mxu0 0.0
    %773 = vmatpush1.msra.mxu0 0.0
    %774 = vmatprep.subr.mxu0 0.0
    %775 = vmatpush1.msra.mxu0 0.0
    %776 = vmatprep.subr.mxu0 0.0
    %777 = vmatpush1.msra.mxu0 0.0
    %778 = vmatprep.subr.mxu0 0.0
    %779 = vmatpush1.msra.mxu0 0.0
    %780 = vmatprep.subr.mxu0 0.0
    %781 = vmatpush1.msra.mxu0 0.0
    %782 = vmatprep.mubr.f32.mxu0 0.0
    %783 = vmatmul.mubr.f32.gmra.mrb[0].mxu0 %v270
    %v784 = vpop.f32.mrb[0].mxu0
    %v785 = vadd.f32 0.0, %v784
    %v786 = vpop.f32.mrb[0].mxu0
    %787 = vmatprep.mubr.f32.mxu0 0.0
    %788 = vmatmul.mubr.f32.gmra.mrb[0].mxu0 %v273
    %v789 = vpop.f32.mrb[0].mxu0
    %v790 = vadd.f32 0.0, %v789
    %v791 = vpop.f32.mrb[0].mxu0
    %792 = vmatprep.mubr.f32.mxu0 0.0
    %793 = vmatmul.mubr.f32.gmra.mrb[0].mxu0 %v276
    %v794 = vpop.f32.mrb[0].mxu0
    %v795 = vadd.f32 0.0, %v794
    %v796 = vpop.f32.mrb[0].mxu0
    %797 = vmatprep.mubr.f32.mxu0 0.0
    %798 = vmatmul.mubr.f32.gmra.mrb[0].mxu0 %v279
    %v799 = vpop.f32.mrb[0].mxu0
    %v800 = vadd.f32 0.0, %v799
    %v801 = vpop.f32.mrb[0].mxu0
    %802 = vmatprep.mubr.f32.mxu0 0.0
    %803 = vmatmul.mubr.f32.gmra.mrb[0].mxu0 %v282
    %v804 = vpop.f32.mrb[0].mxu0
    %v805 = vadd.f32 0.0, %v804
    %v806 = vpop.f32.mrb[0].mxu0
    %807 = vmatprep.mubr.f32.mxu0 0.0
    %808 = vmatmul.mubr.f32.gmra.mrb[0].mxu0 %v285
    %v809 = vpop.f32.mrb[0].mxu0
    %v810 = vadd.f32 0.0, %v809
    %v811 = vpop.f32.mrb[0].mxu0
    %812 = vmatprep.mubr.f32.mxu0 0.0
    %813 = vmatmul.mubr.f32.gmra.mrb[0].mxu0 %v288
    %v814 = vpop.f32.mrb[0].mxu0
    %v815 = vadd.f32 0.0, %v814
    %v816 = vpop.f32.mrb[0].mxu0
    %817 = vmatprep.mubr.f32.mxu0 0.0
    %818 = vmatmul.mubr.f32.gmra.mrb[0].mxu0 %v291
    %v819 = vpop.f32.mrb[0].mxu0
    %v820 = vadd.f32 0.0, %v819
    %v821 = vpop.f32.mrb[0].mxu0
    %822 = vmatprep.mubr.f32.mxu0 0.0
    %823 = vmatmul.mubr.f32.gmra.mrb[0].mxu0 %v294
    %v824 = vpop.f32.mrb[0].mxu0
    %v825 = vadd.f32 0.0, %v824
    %v826 = vpop.f32.mrb[0].mxu0
    %827 = vmatprep.mubr.f32.mxu0 0.0
    %828 = vmatmul.mubr.f32.gmra.mrb[0].mxu0 %v297
    %v829 = vpop.f32.mrb[0].mxu0
    %v830 = vadd.f32 0.0, %v829
    %v831 = vpop.f32.mrb[0].mxu0
    %832 = vdwg.mxu0
    %841 = vrot.lane.b32.xlu0 %v63, 96
    %v842 = vpop.permute.xlu0 %841
    %843 = vrot.lane.b32.xlu0 %v64, 96
    %v844 = vpop.permute.xlu0 %843
    %845 = vrot.lane.b32.xlu0 %v65, 96
    %v846 = vpop.permute.xlu0 %845
    %847 = vrot.lane.b32.xlu0 %v66, 96
    %v848 = vpop.permute.xlu0 %847
    %849 = vrot.lane.b32.xlu0 %v67, 96
    %v850 = vpop.permute.xlu0 %849
    %851 = vrot.lane.b32.xlu0 %v68, 96
    %v852 = vpop.permute.xlu0 %851
    %853 = vrot.lane.b32.xlu0 %v69, 96
    %v854 = vpop.permute.xlu0 %853
    %855 = vrot.lane.b32.xlu0 %v70, 96
    %v856 = vpop.permute.xlu0 %855
    %v857 = vsel %vm438, %v842, %v844
    %v858 = vsel %vm438, %v846, %v848
    %v859 = vsel %vm438, %v850, %v852
    %v860 = vsel %vm438, %v854, %v856
    %v870 = vsel %vm179, %v785, 0
    %v873 = vsel %vm179, %v790, 0
    %v876 = vsel %vm179, %v795, 0
    %v879 = vsel %vm179, %v800, 0
    %v882 = vsel %vm179, %v805, 0
    %v885 = vsel %vm179, %v810, 0
    %v888 = vsel %vm179, %v815, 0
    %v891 = vsel %vm179, %v820, 0
    %v894 = vsel %vm179, %v825, 0
    %v897 = vsel %vm179, %v830, 0
    %899 = vmatprep.subr.mxu0 %v844
    %900 = vmatpush1.msra.mxu0 %v857
    %901 = vmatprep.subr.mxu0 %v848
    %902 = vmatpush1.msra.mxu0 %v858
    %903 = vmatprep.subr.mxu0 %v852
    %904 = vmatpush1.msra.mxu0 %v859
    %905 = vmatprep.subr.mxu0 %v856
    %906 = vmatpush1.msra.mxu0 %v860
    %907 = vmatprep.subr.mxu0 0.0
    %908 = vmatpush1.msra.mxu0 0.0
    %909 = vmatprep.subr.mxu0 0.0
    %910 = vmatpush1.msra.mxu0 0.0
    %911 = vmatprep.subr.mxu0 0.0
    %912 = vmatpush1.msra.mxu0 0.0
    %913 = vmatprep.subr.mxu0 0.0
    %914 = vmatpush1.msra.mxu0 0.0
    %915 = vmatprep.subr.mxu0 0.0
    %916 = vmatpush1.msra.mxu0 0.0
    %917 = vmatprep.subr.mxu0 0.0
    %918 = vmatpush1.msra.mxu0 0.0
    %919 = vmatprep.subr.mxu0 0.0
    %920 = vmatpush1.msra.mxu0 0.0
    %921 = vmatprep.subr.mxu0 0.0
    %922 = vmatpush1.msra.mxu0 0.0
    %923 = vmatprep.subr.mxu0 0.0
    %924 = vmatpush1.msra.mxu0 0.0
    %925 = vmatprep.subr.mxu0 0.0
    %926 = vmatpush1.msra.mxu0 0.0
    %927 = vmatprep.subr.mxu0 0.0
    %928 = vmatpush1.msra.mxu0 0.0
    %929 = vmatprep.subr.mxu0 0.0
    %930 = vmatpush1.msra.mxu0 0.0
    %931 = vmatprep.subr.mxu0 0.0
    %932 = vmatpush1.msra.mxu0 0.0
    %933 = vmatprep.subr.mxu0 0.0
    %934 = vmatpush1.msra.mxu0 0.0
    %935 = vmatprep.subr.mxu0 0.0
    %936 = vmatpush1.msra.mxu0 0.0
    %937 = vmatprep.subr.mxu0 0.0
    %938 = vmatpush1.msra.mxu0 0.0
    %939 = vmatprep.subr.mxu0 0.0
    %940 = vmatpush1.msra.mxu0 0.0
    %941 = vmatprep.subr.mxu0 0.0
    %942 = vmatpush1.msra.mxu0 0.0
    %943 = vmatprep.subr.mxu0 0.0
    %944 = vmatpush1.msra.mxu0 0.0
    %945 = vmatprep.subr.mxu0 0.0
    %946 = vmatpush1.msra.mxu0 0.0
    %947 = vmatprep.subr.mxu0 0.0
    %948 = vmatpush1.msra.mxu0 0.0
    %949 = vmatprep.subr.mxu0 0.0
    %950 = vmatpush1.msra.mxu0 0.0
    %951 = vmatprep.subr.mxu0 0.0
    %952 = vmatpush1.msra.mxu0 0.0
    %953 = vmatprep.subr.mxu0 0.0
    %954 = vmatpush1.msra.mxu0 0.0
    %955 = vmatprep.subr.mxu0 0.0
    %956 = vmatpush1.msra.mxu0 0.0
    %957 = vmatprep.subr.mxu0 0.0
    %958 = vmatpush1.msra.mxu0 0.0
    %959 = vmatprep.subr.mxu0 0.0
    %960 = vmatpush1.msra.mxu0 0.0
    %961 = vmatprep.subr.mxu0 0.0
    %962 = vmatpush1.msra.mxu0 0.0
    %963 = vmatprep.mubr.f32.mxu0 0.0
    %964 = vmatmul.mubr.f32.gmra.mrb[0].mxu0 %v870
    %v965 = vpop.f32.mrb[0].mxu0
    %v966 = vadd.f32 0.0, %v965
    %v967 = vpop.f32.mrb[0].mxu0
    %968 = vmatprep.mubr.f32.mxu0 0.0
    %969 = vmatmul.mubr.f32.gmra.mrb[0].mxu0 %v873
    %v970 = vpop.f32.mrb[0].mxu0
    %v971 = vadd.f32 0.0, %v970
    %v972 = vpop.f32.mrb[0].mxu0
    %973 = vmatprep.mubr.f32.mxu0 0.0
    %974 = vmatmul.mubr.f32.gmra.mrb[0].mxu0 %v876
    %v975 = vpop.f32.mrb[0].mxu0
    %v976 = vadd.f32 0.0, %v975
    %v977 = vpop.f32.mrb[0].mxu0
    %978 = vmatprep.mubr.f32.mxu0 0.0
    %979 = vmatmul.mubr.f32.gmra.mrb[0].mxu0 %v879
    %v980 = vpop.f32.mrb[0].mxu0
    %v981 = vadd.f32 0.0, %v980
    %v982 = vpop.f32.mrb[0].mxu0
    %983 = vmatprep.mubr.f32.mxu0 0.0
    %984 = vmatmul.mubr.f32.gmra.mrb[0].mxu0 %v882
    %v985 = vpop.f32.mrb[0].mxu0
    %v986 = vadd.f32 0.0, %v985
    %v987 = vpop.f32.mrb[0].mxu0
    %988 = vmatprep.mubr.f32.mxu0 0.0
    %989 = vmatmul.mubr.f32.gmra.mrb[0].mxu0 %v885
    %v990 = vpop.f32.mrb[0].mxu0
    %v991 = vadd.f32 0.0, %v990
    %v992 = vpop.f32.mrb[0].mxu0
    %993 = vmatprep.mubr.f32.mxu0 0.0
    %994 = vmatmul.mubr.f32.gmra.mrb[0].mxu0 %v888
    %v995 = vpop.f32.mrb[0].mxu0
    %v996 = vadd.f32 0.0, %v995
    %v997 = vpop.f32.mrb[0].mxu0
    %998 = vmatprep.mubr.f32.mxu0 0.0
    %999 = vmatmul.mubr.f32.gmra.mrb[0].mxu0 %v891
    %v1000 = vpop.f32.mrb[0].mxu0
    %v1001 = vadd.f32 0.0, %v1000
    %v1002 = vpop.f32.mrb[0].mxu0
    %1003 = vmatprep.mubr.f32.mxu0 0.0
    %1004 = vmatmul.mubr.f32.gmra.mrb[0].mxu0 %v894
    %v1005 = vpop.f32.mrb[0].mxu0
    %v1006 = vpop.f32.mrb[0].mxu0
    %v1007 = vadd.f32 0.0, %v1006
    %1008 = vmatprep.mubr.f32.mxu0 0.0
    %1009 = vmatmul.mubr.f32.gmra.mrb[0].mxu0 %v897
    %v1010 = vpop.f32.mrb[0].mxu0
    %v1011 = vpop.f32.mrb[0].mxu0
    %v1012 = vadd.f32 0.0, %v1011
    %1013 = vdwg.mxu0
    %1016 = vrot.lane.b32.xlu0 %v976, 96
    %v1017 = vpop.permute.xlu0 %1016
    %1018 = vrot.lane.b32.xlu0 %v981, 96
    %v1019 = vpop.permute.xlu0 %1018
    %v1022 = vadd.f32 %v966, %v1017
    %v1023 = vadd.f32 %v971, %v1019
    %1026 = vrot.lane.b32.xlu0 %v986, 64
    %v1027 = vpop.permute.xlu0 %1026
    %1028 = vrot.lane.b32.xlu0 %v991, 64
    %v1029 = vpop.permute.xlu0 %1028
    %v1032 = vadd.f32 %v1022, %v1027
    %v1033 = vadd.f32 %v1023, %v1029
    %1036 = vrot.lane.b32.xlu0 %v996, 32
    %v1037 = vpop.permute.xlu0 %1036
    %1038 = vrot.lane.b32.xlu0 %v1001, 32
    %v1039 = vpop.permute.xlu0 %1038
    %v1042 = vadd.f32 %v1032, %v1037
    %v1043 = vadd.f32 %v1033, %v1039
    %v1044 = vadd.f32 %v1042, %v1007
    %v1045 = vadd.f32 %v1043, %v1012
    %v1046 = vadd.f32 %v710, %v1044
    %v1047 = vadd.f32 %v715, %v1045
    %1048 = vst.msk [vmem:[#allocation7] sm:$0xff] %vm179, %v1046
    %1049 = vst.msk [vmem:[#allocation7 + $0x8] sm:$0xff] %vm179, %v1047
    // Predicated region
    $region30: #{tpu_custom_call.1} parent=1 // pred_check
      _
    $region31: #{tpu_custom_call.1} parent=1 // pred_check_branch
      %1051 = sbr.rel (0) target = $region33
    $region32: #{tpu_custom_call.1} parent=1 // pred_region
      %s1053 = ssub.s32 256, 256
      %1054 = vsyncadd [#allocation4], %s1053
      %s1055 = sshll.u32 [#allocation7], 4
      %s1056 = int_to_ptr.vmem [resolvable:$true] %s1055
      %1061 = dma.vmem_to_hbm [thread:$0]  %s1056, 256, %s5, [#allocation4], 128, 128, 8
    $region33: #{tpu_custom_call.1} parent=1 // pred_fallthru
      _
    // Predicated region
    $region34: #{tpu_custom_call.1} parent=1 // pred_check
      _
    $region35: #{tpu_custom_call.1} parent=1 // pred_check_branch
      %1063 = sbr.rel (0) target = $region37
    $region36: #{tpu_custom_call.1} parent=1 // pred_region
      %1064 = dma.done [#allocation4], 256
    $region37: #{tpu_custom_call.1} parent=1 // pred_fallthru
      _
    %1065 = vsyncpa [#allocation3], 1
    %1066 = vsyncpa [#allocation6], 1
    %1067 = vsyncpa [#allocation4], 1

</llo_original>
